<compile_context>
chip_gen: v7x
topology: tpu7x:2x2x1
jax: 0.10.0
libtpu: 0.0.40
codegen_flags: <defaults>
</compile_context>

<pallas_src>
import functools

import jax
import jax.numpy as jnp
from jax.experimental import pallas as pl
from jax.experimental.pallas import tpu as pltpu


def _round_up(a, b):
    return (a + b - 1) // b * b


def _quant_scalars(v, n_bits, minvalue=1e-8):
    """Global min / scale / inv_scale over the whole tensor (quant_axis covers it)."""
    mn = jnp.min(v)
    mx = jnp.max(v)
    scale = jnp.maximum(mx - mn, minvalue) / float(n_bits ** 2 - 1)
    inv_scale = 1.0 / scale
    return mn, scale, inv_scale


def _fake_quant(v, n_bits):
    mn, scale, inv_scale = _quant_scalars(v, n_bits)
    # Multiply by the precomputed reciprocal (same formulation as the kernel so
    # rounding decisions are bit-identical between kernel and reference).
    return jnp.round((v - mn) * inv_scale) * scale + mn


def _qalinear_kernel(qp_ref, x_ref, w_ref, b_ref, o_ref, acc_ref, *, do_quant):
    """One (i, j, k) grid step: acc[i,j] += x[i,k] @ dequant(w[k,j]); add bias at last k."""
    k = pl.program_id(2)

    @pl.when(k == 0)
    def _():
        acc_ref[...] = jnp.zeros_like(acc_ref)

    w = w_ref[...]
    if do_quant:
        w_min = qp_ref[0]        # global scalars, precomputed in the wrapper (SMEM)
        w_inv_scale = qp_ref[1]
        w_scale = qp_ref[2]
        w = jnp.round((w - w_min) * w_inv_scale) * w_scale + w_min

    acc_ref[...] += jnp.dot(x_ref[...], w, preferred_element_type=jnp.float32)

    @pl.when(k == pl.num_programs(2) - 1)
    def _():
        o_ref[...] = (acc_ref[...] + b_ref[...]).astype(o_ref.dtype)


def qalinear(x, weight, bias, n_bits=8, *, tm=128, tn=256, tk=256):
    """x: (B, in_dim) f32, weight: (in_dim, out_dim) f32, bias: (out_dim,) f32."""
    B, K = x.shape
    K2, N = weight.shape
    assert K == K2

    do_quant = (n_bits != 16)
    if do_quant:
        # Global weight quant scalars (MUST be global over the whole weight —
        # per-tile stats would silently change the quantization).
        w_min, w_scale, w_inv_scale = _quant_scalars(weight, n_bits)
        qparams = jnp.stack([w_min, w_inv_scale, w_scale]).astype(jnp.float32)
        b_q = _fake_quant(bias, n_bits)     # bias is tiny -> quantize in the wrapper
    else:
        qparams = jnp.array([0.0, 1.0, 1.0], dtype=jnp.float32)
        b_q = bias

    # Tile sizes: clamp to (padded) problem size; keep lane dims multiples of 128
    # and sublane dims multiples of 8 so every block is tile-aligned and stores
    # are lane-dense (no masked vst).
    tm = min(tm, _round_up(B, 8))
    tn = min(tn, _round_up(N, 128))
    tk = min(tk, _round_up(K, 128))
    Mp, Kp, Np = _round_up(B, tm), _round_up(K, tk), _round_up(N, tn)

    x_p = jnp.pad(x, ((0, Mp - B), (0, Kp - K))) if (Mp != B or Kp != K) else x
    w_p = jnp.pad(weight, ((0, Kp - K), (0, Np - N))) if (Kp != K or Np != N) else weight
    b_p = jnp.pad(b_q, ((0, Np - N),)) if Np != N else b_q
    b2 = b_p.reshape(1, Np).astype(jnp.float32)

    grid = (Mp // tm, Np // tn, Kp // tk)
    kernel = functools.partial(_qalinear_kernel, do_quant=do_quant)

    out = pl.pallas_call(
        kernel,
        out_shape=jax.ShapeDtypeStruct((Mp, Np), jnp.float32),
        grid_spec=pltpu.PrefetchScalarGridSpec(
            num_scalar_prefetch=0,
            grid=grid,
            in_specs=[
                # Tiny quant-scalar vector, whole array resident in SMEM.
                pl.BlockSpec(memory_space=pltpu.MemorySpace.SMEM),
                pl.BlockSpec((tm, tk), lambda i, j, k: (i, k)),
                pl.BlockSpec((tk, tn), lambda i, j, k: (k, j)),
                pl.BlockSpec((1, tn), lambda i, j, k: (0, j)),
            ],
            out_specs=pl.BlockSpec((tm, tn), lambda i, j, k: (i, j)),
            scratch_shapes=[pltpu.VMEM((tm, tn), jnp.float32)],
        ),
        compiler_params=pltpu.CompilerParams(
            dimension_semantics=("parallel", "parallel", "arbitrary"),
            vmem_limit_bytes=32 * 1024 * 1024,   # safe on v5e/v6e/v7x
        ),
        cost_estimate=pl.CostEstimate(
            flops=2 * Mp * Np * Kp,
            transcendentals=0,
            bytes_accessed=4 * (Mp * Kp + Kp * Np + Mp * Np + Np),
        ),
    )(qparams, x_p, w_p, b2)

    return out[:B, :N]


def qalinear_ref(x, weight, bias, n_bits=8):
    """Pure-JAX reference mirroring the PyTorch forward."""
    if n_bits != 16:
        w = _fake_quant(weight, n_bits)   # quant_axis=(-2,-1) over 2-D weight -> global
        b = _fake_quant(bias, n_bits)     # axis=-1 over 1-D bias -> global
    else:
        w, b = weight, bias
    return x @ w + b


if __name__ == "__main__":
    key = jax.random.PRNGKey(0)
    kx, kw, kb = jax.random.split(key, 3)

    # Shapes chosen small but non-multiples of the tile sizes so the padding,
    # multi-tile N and K-accumulation paths are all exercised.
    in_dim, out_dim, batch, n_bits = 160, 200, 12, 8

    # Parameter init matching the PyTorch __init__: (2*U[0,1) - 1) / sqrt(in_dim)
    weight = (2.0 * jax.random.uniform(kw, (in_dim, out_dim), jnp.float32) - 1.0) / (in_dim ** 0.5)
    bias = (2.0 * jax.random.uniform(kb, (out_dim,), jnp.float32) - 1.0) / (in_dim ** 0.5)
    x = jax.random.normal(kx, (batch, in_dim), jnp.float32)

    # Quantized path (n_bits=8), grid = (1, 2, 2) with tm=16, tn=tk=128.
    out = jax.block_until_ready(qalinear(x, weight, bias, n_bits=n_bits, tm=128, tn=128, tk=128))
    ref = qalinear_ref(x, weight, bias, n_bits=n_bits)
    assert out.shape == (batch, out_dim)
    assert jnp.allclose(out, ref, atol=1e-5, rtol=1e-4), "mismatch vs reference (n_bits=8)"

    # n_bits=16 path (no quantization).
    out16 = jax.block_until_ready(qalinear(x, weight, bias, n_bits=16))
    ref16 = qalinear_ref(x, weight, bias, n_bits=16)
    assert jnp.allclose(out16, ref16, atol=1e-5, rtol=1e-4), "mismatch vs reference (n_bits=16)"

    # Tiny shape (like the original module example) to exercise heavy padding.
    wt = (2.0 * jax.random.uniform(kw, (32, 32), jnp.float32) - 1.0) / (32 ** 0.5)
    bt = (2.0 * jax.random.uniform(kb, (32,), jnp.float32) - 1.0) / (32 ** 0.5)
    xt = jax.random.normal(kx, (8, 32), jnp.float32)
    out_t = jax.block_until_ready(qalinear(xt, wt, bt, n_bits=8))
    ref_t = qalinear_ref(xt, wt, bt, n_bits=8)
    assert jnp.allclose(out_t, ref_t, atol=1e-5, rtol=1e-4), "mismatch vs reference (tiny)"

    print("KERNEL_OK")
</pallas_src>

<mosaic_0001>
module attributes {stable_mosaic.version = 11 : i64} {
  func.func @_qalinear_kernel(%arg0: i32, %arg1: i32, %arg2: i32, %arg3: memref<3xf32, #tpu.memory_space<smem>>, %arg4: memref<16x128xf32, #tpu.memory_space<vmem>>, %arg5: memref<128x128xf32, #tpu.memory_space<vmem>>, %arg6: memref<1x128xf32, #tpu.memory_space<vmem>>, %arg7: memref<16x128xf32, #tpu.memory_space<vmem>>, %arg8: memref<16x128xf32, #tpu.memory_space<vmem>>) attributes {dimension_semantics = [#tpu.dimension_semantics<parallel>, #tpu.dimension_semantics<parallel>, #tpu.dimension_semantics<arbitrary>], iteration_bounds = array<i64: 1, 2, 2>, scalar_prefetch = 0 : i64, scratch_operands = 1 : i64, tpu.core_type = #tpu.core_type<tc>, window_params = [{transform_indices = @transform_0, window_bounds = array<i64: 3>}, {transform_indices = @transform_1, window_bounds = array<i64: 16, 128>}, {transform_indices = @transform_2, window_bounds = array<i64: 128, 128>}, {transform_indices = @transform_3, window_bounds = array<i64: 1, 128>}, {transform_indices = @transform_4, window_bounds = array<i64: 16, 128>}]} {
    %c0_i32 = arith.constant 0 : i32
    %0 = arith.cmpi eq, %arg2, %c0_i32 : i32
    %1 = arith.extui %0 : i1 to i32
    %c0_i32_0 = arith.constant 0 : i32
    %2 = arith.cmpi ne, %1, %c0_i32_0 : i32
    scf.if %2 {
      %cst_10 = arith.constant 0.000000e+00 : f32
      %24 = vector.broadcast %cst_10 : f32 to vector<16x128xf32>
      %c0_11 = arith.constant 0 : index
      %c0_12 = arith.constant 0 : index
      %25 = vector.load %arg8[%c0_11, %c0_12] : memref<16x128xf32, #tpu.memory_space<vmem>>, vector<16x128xf32>
      tpu.vector_store %arg8[%c0_11, %c0_12], %24 {strides = array<i32>} : memref<16x128xf32, #tpu.memory_space<vmem>>, vector<16x128xf32>,
    } else {
    }
    %c0 = arith.constant 0 : index
    %c0_1 = arith.constant 0 : index
    %3 = vector.load %arg5[%c0, %c0_1] : memref<128x128xf32, #tpu.memory_space<vmem>>, vector<128x128xf32>
    %c0_2 = arith.constant 0 : index
    %4 = memref.load %arg3[%c0_2] : memref<3xf32, #tpu.memory_space<smem>>
    %c1 = arith.constant 1 : index
    %5 = memref.load %arg3[%c1] : memref<3xf32, #tpu.memory_space<smem>>
    %c2 = arith.constant 2 : index
    %6 = memref.load %arg3[%c2] : memref<3xf32, #tpu.memory_space<smem>>
    %7 = vector.broadcast %4 : f32 to vector<128x128xf32>
    %8 = arith.subf %3, %7 : vector<128x128xf32>
    %9 = vector.broadcast %5 : f32 to vector<128x128xf32>
    %10 = arith.mulf %8, %9 : vector<128x128xf32>
    %11 = math.roundeven %10 : vector<128x128xf32>
    %12 = vector.broadcast %6 : f32 to vector<128x128xf32>
    %13 = arith.mulf %11, %12 : vector<128x128xf32>
    %14 = vector.broadcast %4 : f32 to vector<128x128xf32>
    %15 = arith.addf %13, %14 : vector<128x128xf32>
    %c0_3 = arith.constant 0 : index
    %c0_4 = arith.constant 0 : index
    %16 = vector.load %arg8[%c0_3, %c0_4] : memref<16x128xf32, #tpu.memory_space<vmem>>, vector<16x128xf32>
    %c0_5 = arith.constant 0 : index
    %c0_6 = arith.constant 0 : index
    %17 = vector.load %arg4[%c0_5, %c0_6] : memref<16x128xf32, #tpu.memory_space<vmem>>, vector<16x128xf32>
    %cst = arith.constant dense<0.000000e+00> : vector<16x128xf32>
    %18 = tpu.matmul %17, %15, %cst {dimension_numbers = #tpu.dot_dimension_numbers<[1], [0], [0], [1], [0, 0, 1, 1], [], []>} : vector<16x128xf32>, vector<128x128xf32>, vector<16x128xf32> -> vector<16x128xf32>
    %19 = arith.addf %16, %18 : vector<16x128xf32>
    %c0_7 = arith.constant 0 : index
    %c0_8 = arith.constant 0 : index
    %20 = vector.load %arg8[%c0_7, %c0_8] : memref<16x128xf32, #tpu.memory_space<vmem>>, vector<16x128xf32>
    tpu.vector_store %arg8[%c0_7, %c0_8], %19 {strides = array<i32>} : memref<16x128xf32, #tpu.memory_space<vmem>>, vector<16x128xf32>,
    %c1_i32 = arith.constant 1 : i32
    %21 = arith.cmpi eq, %arg2, %c1_i32 : i32
    %22 = arith.extui %21 : i1 to i32
    %c0_i32_9 = arith.constant 0 : i32
    %23 = arith.cmpi ne, %22, %c0_i32_9 : i32
    scf.if %23 {
      %c0_10 = arith.constant 0 : index
      %c0_11 = arith.constant 0 : index
      %24 = vector.load %arg8[%c0_10, %c0_11] : memref<16x128xf32, #tpu.memory_space<vmem>>, vector<16x128xf32>
      %c0_12 = arith.constant 0 : index
      %c0_13 = arith.constant 0 : index
      %25 = vector.load %arg6[%c0_12, %c0_13] : memref<1x128xf32, #tpu.memory_space<vmem>>, vector<1x128xf32>
      %26 = vector.broadcast %25 : vector<1x128xf32> to vector<16x128xf32>
      %27 = arith.addf %24, %26 : vector<16x128xf32>
      %c0_14 = arith.constant 0 : index
      %c0_15 = arith.constant 0 : index
      %28 = vector.load %arg7[%c0_14, %c0_15] : memref<16x128xf32, #tpu.memory_space<vmem>>, vector<16x128xf32>
      tpu.vector_store %arg7[%c0_14, %c0_15], %27 {strides = array<i32>} : memref<16x128xf32, #tpu.memory_space<vmem>>, vector<16x128xf32>,
    } else {
    }
    return
  }
  func.func @transform_0(%arg0: i32, %arg1: i32, %arg2: i32) -> i32 {
    %c0_i32 = arith.constant 0 : i32
    %c0_i32_0 = arith.constant 0 : i32
    return %c0_i32 : i32
  }
  func.func @transform_1(%arg0: i32, %arg1: i32, %arg2: i32) -> (i32, i32) {
    %c0_i32 = arith.constant 0 : i32
    return %arg0, %arg2 : i32, i32
  }
  func.func @transform_2(%arg0: i32, %arg1: i32, %arg2: i32) -> (i32, i32) {
    %c0_i32 = arith.constant 0 : i32
    return %arg2, %arg1 : i32, i32
  }
  func.func @transform_3(%arg0: i32, %arg1: i32, %arg2: i32) -> (i32, i32) {
    %c0_i32 = arith.constant 0 : i32
    %c0_i32_0 = arith.constant 0 : i32
    return %c0_i32, %arg1 : i32, i32
  }
  func.func @transform_4(%arg0: i32, %arg1: i32, %arg2: i32) -> (i32, i32) {
    %c0_i32 = arith.constant 0 : i32
    return %arg0, %arg1 : i32, i32
  }
}

</mosaic_0001>

<llo_original>
// kernel: tpu_custom_call.1
$region0: #{tpu_custom_call.1}
  #allocation0 [shape = 'u32[]', space=smem, size = 0x4, offset = 0x4, fixed_abs, tag = 'smem constant byte address 0x4 - core index']
  #allocation1 [shape = 'u32[144,128]{1,0:T(1,128)}', space=vmem, size = 0x12000, scoped, tag = 'internal scratch']
  #allocation2 [shape = 'f32[16,128]{1,0:T(8,128)}', space=vmem, size = 0x2000, scoped, tag = 'scratch operand']
  %s0 = inlined_call_operand.hbm [shape: f32[3], index: 0, kind: input, shape index: {}]
  %s1 = inlined_call_operand.hbm [shape: f32[16,256], index: 1, kind: input, shape index: {}]
  %s2 = inlined_call_operand.hbm [shape: f32[256,256], index: 2, kind: input, shape index: {}]
  %s3 = inlined_call_operand.vmem [shape: f32[1,256], index: 3, kind: input, shape index: {}]
  %s4 = inlined_call_operand.hbm [shape: f32[16,256], index: 4, kind: output, shape index: {}]
  %s5 = sld [smem:[#allocation0]]
  $region69: #{tpu_custom_call.1} parent=0
    _
  %s7 = ssub.s32 1, %s5
  %s8 = scalar_select 0, %s7, %s5
  $region1: #{tpu_custom_call.1} parent=0
    #allocation3 [shape = 'u8[512]{0}', space=smem, size = 0x200, scoped, tag = 'input window, operand 0, single buffered']
    #allocation4 [shape = 's32[2]{0}', space=sflag, size = 0x8, scoped, tag = 'scoped memory for tpu_custom_call.1']
    #allocation5 [shape = 's32[2]{0}', space=sflag, size = 0x8, scoped, tag = 'scoped memory for tpu_custom_call.1']
    #allocation6 [shape = 's32[2]{0}', space=sflag, size = 0x8, scoped, tag = 'scoped memory for tpu_custom_call.1']
    #allocation7 [shape = 'u8[16384]{0}', space=vmem, size = 0x4000, scoped, tag = 'input window, operand 1']
    #allocation8 [shape = 'u8[131072]{0}', space=vmem, size = 0x20000, scoped, tag = 'input window, operand 2']
    #allocation9 [shape = 's32[2]{0}', space=sflag, size = 0x8, scoped, tag = 'scoped memory for tpu_custom_call.1']
    #allocation10 [shape = 'u8[16384]{0}', space=vmem, size = 0x4000, scoped, tag = 'output window, operand 0']
    %9 = vsyncpa [#allocation6], 0
    %10 = vsyncpa [#allocation4], 0
    %s11 = scalar_lea.sflag [#allocation4], 1
    %12 = vsyncpa %s11, 0
    %13 = vsyncpa [#allocation9], 0
    %s14 = scalar_lea.sflag [#allocation9], 1
    %15 = vsyncpa %s14, 0
    %16 = vsyncpa [#allocation5], 0
    %s17 = scalar_lea.sflag [#allocation5], 1
    %18 = vsyncpa %s17, 0
    loop: start=0, step=1, limit=6
    $region2: #{tpu_custom_call.1} parent=1 // loop_pre_header
      _
    $region3: #{tpu_custom_call.1} parent=1 // loop_header
      %s20 = sphi 0, %s24
      %p21 = scmp.ge.s32.totalorder %s20, 6
      %s27 = sphi 0, %s46
      %s28 = sphi 0, %s42
      %s29 = sphi 0, %s38
      %s30 = sphi 0, %s27
      %s31 = sphi 0, %s28
      %s32 = sphi 0, %s29
      %s33 = sphi 0, %s30
      %s34 = sphi 0, %s31
      %s35 = sphi 0, %s32
      %s47 = sphi 0, %s47
      %s49 = sphi 0, %s47
      %s50 = sphi 0, %s49
      %s64 = sphi 0, %s50
      %s72 = sphi 0, %s74
      %s75 = sphi 0, %s72
      %s76 = sphi 0, %s75
      %s92 = sphi 0, %s76
      %s100 = sphi 0, %s102
      %s103 = sphi 0, %s100
      %s104 = sphi 0, %s103
      %s120 = sphi 0, %s104
      %s126 = sphi 0, %s128
      %s129 = sphi 0, %s126
      %s130 = sphi 0, %s129
      %s146 = sphi 0, %s130
      %s154 = sphi 0, %s156
      %s157 = sphi 0, %s154
      %s158 = sphi 0, %s157
      %s174 = sphi 0, %s158
    $region4: #{tpu_custom_call.1} parent=1 // loop_header_branch
      %23 = sbr.rel (%p21) target = $region8
    $region5: #{tpu_custom_call.1} parent=1 // loop_body
      %s25 = ssub.s32 %s20, 1
      %s26 = ssub.s32 %s20, 2
      %s36 = sadd.s32 1, %s29
      %p37 = scmp.ge.s32.totalorder %s36, 2
      %s38 = scalar_select %p37, 0, %s36
      %s39 = sadd.s32 1, %s28
      %s40 = scalar_select %p37, %s39, %s28
      %p41 = scmp.ge.s32.totalorder %s40, 2
      %s42 = scalar_select %p41, 0, %s40
      %s43 = sadd.s32 1, %s27
      %s44 = scalar_select %p41, %s43, %s27
      %p45 = scmp.ge.s32.totalorder %s44, 1
      %s46 = scalar_select %p45, 0, %s44
      %s48 = sadd.s32 %s47, 1
      %p51 = scmp.eq.s32.totalorder %s20, 3
      %p52 = scmp.ne.s32.totalorder %s47, %s49
      %p53 = scmp.eq.s32.totalorder %s20, 0
      %p54 = por %p52, %p53
      %p55 = scmp.ne.s32.totalorder %s47, %s49
      %p56 = scmp.eq.s32.totalorder %s25, 3
      %p57 = por %p55, %p56
      %p58 = scmp.ne.s32.totalorder %s49, %s50
      %p59 = scmp.eq.s32.totalorder %s25, 0
      %p60 = por %p58, %p59
      %p61 = scmp.ne.s32.totalorder %s49, %s50
      %p62 = scmp.eq.s32.totalorder %s26, 3
      %p63 = por %p61, %p62
      %p65 = scmp.ne.s32.totalorder %s50, %s64
      %p66 = scmp.eq.s32.totalorder %s26, 0
      %p67 = por %p65, %p66
      %s68 = ssub.s32 %s27, %s46
      %s69 = ssub.s32 %s29, %s38
      %s70 = sor.u32 %s68, %s69
      %p71 = scmp.eq.s32.totalorder %s70, 0
      %s73 = sadd.s32 %s72, 1
      %s74 = scalar_select %p71, %s72, %s73
      %p77 = pneg %p71
      %p78 = scmp.eq.s32.totalorder %s20, 3
      %p79 = por %p77, %p78
      %p80 = scmp.ne.s32.totalorder %s72, %s75
      %p81 = scmp.eq.s32.totalorder %s20, 0
      %p82 = por %p80, %p81
      %p83 = scmp.ne.s32.totalorder %s72, %s75
      %p84 = scmp.eq.s32.totalorder %s25, 3
      %p85 = por %p83, %p84
      %p86 = scmp.ne.s32.totalorder %s75, %s76
      %p87 = scmp.eq.s32.totalorder %s25, 0
      %p88 = por %p86, %p87
      %p89 = scmp.ne.s32.totalorder %s75, %s76
      %p90 = scmp.eq.s32.totalorder %s26, 3
      %p91 = por %p89, %p90
      %p93 = scmp.ne.s32.totalorder %s76, %s92
      %p94 = scmp.eq.s32.totalorder %s26, 0
      %p95 = por %p93, %p94
      %s96 = ssub.s32 %s29, %s38
      %s97 = ssub.s32 %s28, %s42
      %s98 = sor.u32 %s96, %s97
      %p99 = scmp.eq.s32.totalorder %s98, 0
      %s101 = sadd.s32 %s100, 1
      %s102 = scalar_select %p99, %s100, %s101
      %p105 = pneg %p99
      %p106 = scmp.eq.s32.totalorder %s20, 3
      %p107 = por %p105, %p106
      %p108 = scmp.ne.s32.totalorder %s100, %s103
      %p109 = scmp.eq.s32.totalorder %s20, 0
      %p110 = por %p108, %p109
      %p111 = scmp.ne.s32.totalorder %s100, %s103
      %p112 = scmp.eq.s32.totalorder %s25, 3
      %p113 = por %p111, %p112
      %p114 = scmp.ne.s32.totalorder %s103, %s104
      %p115 = scmp.eq.s32.totalorder %s25, 0
      %p116 = por %p114, %p115
      %p117 = scmp.ne.s32.totalorder %s103, %s104
      %p118 = scmp.eq.s32.totalorder %s26, 3
      %p119 = por %p117, %p118
      %p121 = scmp.ne.s32.totalorder %s104, %s120
      %p122 = scmp.eq.s32.totalorder %s26, 0
      %p123 = por %p121, %p122
      %s124 = ssub.s32 %s28, %s42
      %p125 = scmp.eq.s32.totalorder %s124, 0
      %s127 = sadd.s32 %s126, 1
      %s128 = scalar_select %p125, %s126, %s127
      %p131 = pneg %p125
      %p132 = scmp.eq.s32.totalorder %s20, 3
      %p133 = por %p131, %p132
      %p134 = scmp.ne.s32.totalorder %s126, %s129
      %p135 = scmp.eq.s32.totalorder %s20, 0
      %p136 = por %p134, %p135
      %p137 = scmp.ne.s32.totalorder %s126, %s129
      %p138 = scmp.eq.s32.totalorder %s25, 3
      %p139 = por %p137, %p138
      %p140 = scmp.ne.s32.totalorder %s129, %s130
      %p141 = scmp.eq.s32.totalorder %s25, 0
      %p142 = por %p140, %p141
      %p143 = scmp.ne.s32.totalorder %s129, %s130
      %p144 = scmp.eq.s32.totalorder %s26, 3
      %p145 = por %p143, %p144
      %p147 = scmp.ne.s32.totalorder %s130, %s146
      %p148 = scmp.eq.s32.totalorder %s26, 0
      %p149 = por %p147, %p148
      %s150 = ssub.s32 %s27, %s46
      %s151 = ssub.s32 %s28, %s42
      %s152 = sor.u32 %s150, %s151
      %p153 = scmp.eq.s32.totalorder %s152, 0
      %s155 = sadd.s32 %s154, 1
      %s156 = scalar_select %p153, %s154, %s155
      %p159 = pneg %p153
      %p160 = scmp.eq.s32.totalorder %s20, 3
      %p161 = por %p159, %p160
      %p162 = scmp.ne.s32.totalorder %s154, %s157
      %p163 = scmp.eq.s32.totalorder %s20, 0
      %p164 = por %p162, %p163
      %p165 = scmp.ne.s32.totalorder %s154, %s157
      %p166 = scmp.eq.s32.totalorder %s25, 3
      %p167 = por %p165, %p166
      %p168 = scmp.ne.s32.totalorder %s157, %s158
      %p169 = scmp.eq.s32.totalorder %s25, 0
      %p170 = por %p168, %p169
      %p171 = scmp.ne.s32.totalorder %s157, %s158
      %p172 = scmp.eq.s32.totalorder %s26, 3
      %p173 = por %p171, %p172
      %p175 = scmp.ne.s32.totalorder %s158, %s174
      %p176 = scmp.eq.s32.totalorder %s26, 0
      %p177 = por %p175, %p176
      %p178 = scmp.le.s32.totalorder 1, %s20
      %p179 = scmp.lt.s32.totalorder %s20, 5
      %p180 = pnand %p178, %p179
      %p181 = pneg %p180
      // Predicated region
      $region9: #{tpu_custom_call.1} parent=5 // pred_check
        _
      $region10: #{tpu_custom_call.1} parent=5 // pred_check_branch
        %183 = sbr.rel (%p180) target = $region12
      $region11: #{tpu_custom_call.1} parent=5 // pred_region
        %s184 = ssub.s32 %s20, 1
        // Predicated region
        $region13: #{tpu_custom_call.1} parent=11 // pred_check
          %p185 = pneg %p60
        $region14: #{tpu_custom_call.1} parent=11 // pred_check_branch
          %187 = sbr.rel (%p185) target = $region16
        $region15: #{tpu_custom_call.1} parent=11 // pred_region
          %s189 = ssub.s32 16, 16
          %190 = vsyncadd [#allocation6], %s189
          %193 = dma.hbm_to_smem %s0, 16, [#allocation3], [#allocation6]
        $region16: #{tpu_custom_call.1} parent=11 // pred_fallthru
          _
      $region12: #{tpu_custom_call.1} parent=5 // pred_fallthru
        _
      %p194 = scmp.lt.s32.totalorder %s20, 4
      // Predicated region
      $region17: #{tpu_custom_call.1} parent=5 // pred_check
        %p195 = pneg %p194
      $region18: #{tpu_custom_call.1} parent=5 // pred_check_branch
        %197 = sbr.rel (%p195) target = $region20
      $region19: #{tpu_custom_call.1} parent=5 // pred_region
        // Predicated region
        $region21: #{tpu_custom_call.1} parent=19 // pred_check
          %p198 = pneg %p82
        $region22: #{tpu_custom_call.1} parent=19 // pred_check_branch
          %200 = sbr.rel (%p198) target = $region24
        $region23: #{tpu_custom_call.1} parent=19 // pred_region
          %s201 = sand.u32 %s72, 1
          %s202 = scalar_lea.sflag [#allocation4], %s201
          %s203 = sand.u32 %s72, 1
          %s204 = smul.addr %s203, 16
          %s205 = scalar_lea.vmem [#allocation7], %s204
          %s206 = smul.u32 2, %s27
          %s208 = ssub.s32 256, 256
          %209 = vsyncadd %s202, %s208
          %s210 = smul.addr %s206, 2
          %s211 = sadd.s32 %s29, %s210
          %s212 = smul.addr %s211, 128
          %s213 = scalar_lea.hbm %s1, %s212
          %s214 = sshll.u32 %s205, 4
          %s215 = int_to_ptr.vmem [resolvable:$true] %s214
          %220 = dma.hbm_to_vmem [thread:$0]  %s213, 256, %s215, %s202, 256, 128, 8
        $region24: #{tpu_custom_call.1} parent=19 // pred_fallthru
          _
        // Predicated region
        $region25: #{tpu_custom_call.1} parent=19 // pred_check
          %p221 = pneg %p110
        $region26: #{tpu_custom_call.1} parent=19 // pred_check_branch
          %223 = sbr.rel (%p221) target = $region28
        $region27: #{tpu_custom_call.1} parent=19 // pred_region
          %s224 = sand.u32 %s100, 1
          %s225 = scalar_lea.sflag [#allocation9], %s224
          %s226 = sand.u32 %s100, 1
          %s227 = smul.addr %s226, 128
          %s228 = scalar_lea.vmem [#allocation8], %s227
          %s229 = smul.u32 16, %s29
          %s231 = ssub.s32 2048, 2048
          %232 = vsyncadd %s225, %s231
          %s233 = smul.addr %s229, 2
          %s234 = sadd.s32 %s28, %s233
          %s235 = smul.addr %s234, 128
          %s236 = scalar_lea.hbm %s2, %s235
          %s237 = sshll.u32 %s228, 4
          %s238 = int_to_ptr.vmem [resolvable:$true] %s237
          %243 = dma.hbm_to_vmem [thread:$0]  %s236, 2048, %s238, %s225, 256, 128, 8
        $region28: #{tpu_custom_call.1} parent=19 // pred_fallthru
          _
        // Predicated region
        $region29: #{tpu_custom_call.1} parent=19 // pred_check
          %p244 = pneg %p136
        $region30: #{tpu_custom_call.1} parent=19 // pred_check_branch
          %246 = sbr.rel (%p244) target = $region32
        $region31: #{tpu_custom_call.1} parent=19 // pred_region
          %p247 = scmp.lt.s32.totalorder %s28, 1
          %s248 = scalar_select %p247, %s28, 1
          %s249 = scalar_lea.vmem %s3, %s248
        $region32: #{tpu_custom_call.1} parent=19 // pred_fallthru
          _
      $region20: #{tpu_custom_call.1} parent=5 // pred_fallthru
        _
      %p250 = scmp.le.s32.totalorder 1, %s20
      %p251 = scmp.lt.s32.totalorder %s20, 5
      %p252 = pnand %p250, %p251
      %p253 = pneg %p252
      // Predicated region
      $region33: #{tpu_custom_call.1} parent=5 // pred_check
        _
      $region34: #{tpu_custom_call.1} parent=5 // pred_check_branch
        %255 = sbr.rel (%p252) target = $region36
      $region35: #{tpu_custom_call.1} parent=5 // pred_region
        %s256 = ssub.s32 %s20, 1
        // Predicated region
        $region37: #{tpu_custom_call.1} parent=35 // pred_check
          %p257 = pneg %p60
        $region38: #{tpu_custom_call.1} parent=35 // pred_check_branch
          %259 = sbr.rel (%p257) target = $region40
        $region39: #{tpu_custom_call.1} parent=35 // pred_region
          %260 = dma.done [#allocation6], 16
        $region40: #{tpu_custom_call.1} parent=35 // pred_fallthru
          _
        %s261 = sand.u32 %s75, 1
        %s262 = scalar_lea.sflag [#allocation4], %s261
        %s263 = sand.u32 %s75, 1
        %s264 = smul.addr %s263, 16
        %s265 = scalar_lea.vmem [#allocation7], %s264
        // Predicated region
        $region41: #{tpu_custom_call.1} parent=35 // pred_check
          %p266 = pneg %p88
        $region42: #{tpu_custom_call.1} parent=35 // pred_check_branch
          %268 = sbr.rel (%p266) target = $region44
        $region43: #{tpu_custom_call.1} parent=35 // pred_region
          %269 = dma.done %s262, 256
        $region44: #{tpu_custom_call.1} parent=35 // pred_fallthru
          _
        %s270 = sand.u32 %s103, 1
        %s271 = scalar_lea.sflag [#allocation9], %s270
        %s272 = sand.u32 %s103, 1
        %s273 = smul.addr %s272, 128
        %s274 = scalar_lea.vmem [#allocation8], %s273
        // Predicated region
        $region45: #{tpu_custom_call.1} parent=35 // pred_check
          %p275 = pneg %p116
        $region46: #{tpu_custom_call.1} parent=35 // pred_check_branch
          %277 = sbr.rel (%p275) target = $region48
        $region47: #{tpu_custom_call.1} parent=35 // pred_region
          %278 = dma.done %s271, 2048
        $region48: #{tpu_custom_call.1} parent=35 // pred_fallthru
          _
        %279 = sfence
        %p280 = pneg %p60
        %p281 = pneg %p57
        %s282 = sand.u32 %s75, 1
        %s283 = scalar_lea.sflag [#allocation4], %s282
        %s284 = sand.u32 %s75, 1
        %s285 = smul.addr %s284, 16
        %s286 = scalar_lea.vmem [#allocation7], %s285
        %p287 = pneg %p88
        %p288 = pneg %p85
        %s289 = sand.u32 %s103, 1
        %s290 = scalar_lea.sflag [#allocation9], %s289
        %s291 = sand.u32 %s103, 1
        %s292 = smul.addr %s291, 128
        %s293 = scalar_lea.vmem [#allocation8], %s292
        %p294 = pneg %p116
        %p295 = pneg %p113
        %p296 = scmp.lt.s32.totalorder %s31, 1
        %s297 = scalar_select %p296, %s31, 1
        %s298 = scalar_lea.vmem %s3, %s297
        %p299 = pneg %p142
        %p300 = pneg %p139
        %p301 = pneg %p170
        %p302 = pneg %p167
        %s303 = sand.u32 %s157, 1
        %s304 = scalar_lea.sflag [#allocation5], %s303
        %s305 = sand.u32 %s157, 1
        %s306 = smul.addr %s305, 16
        %s307 = scalar_lea.vmem [#allocation10], %s306
        %s308 = smul.u32 2, %s30
        %s309 = smul.u32 16, %s32
        %p310 = scmp.lt.s32.totalorder %s31, 1
        %s311 = scalar_select %p310, %s31, 1
        %s312 = scalar_lea.vmem %s3, %s311
        %s313 = smul.u32 2, %s30
        %p314 = scmp.eq.s32.totalorder %s32, 0
        // Predicated region
        $region49: #{tpu_custom_call.1} parent=35 // pred_check
          %p315 = pneg %p314
        $region50: #{tpu_custom_call.1} parent=35 // pred_check_branch
          %317 = sbr.rel (%p315) target = $region52
        $region51: #{tpu_custom_call.1} parent=35 // pred_region
          %318 = vst [vmem:[#allocation2] sm:$0xff] 0.0
          %319 = vst [vmem:[#allocation2 + $0x8] sm:$0xff] 0.0
        $region52: #{tpu_custom_call.1} parent=35 // pred_fallthru
          _
        %v320 = vld [vmem:[%s274] sm:$0xff]
        %v321 = vld [vmem:[%s274 + $0x8] sm:$0xff]
        %v322 = vld [vmem:[%s274 + $0x10] sm:$0xff]
        %v323 = vld [vmem:[%s274 + $0x18] sm:$0xff]
        %v324 = vld [vmem:[%s274 + $0x20] sm:$0xff]
        %v325 = vld [vmem:[%s274 + $0x28] sm:$0xff]
        %v326 = vld [vmem:[%s274 + $0x30] sm:$0xff]
        %v327 = vld [vmem:[%s274 + $0x38] sm:$0xff]
        %v328 = vld [vmem:[%s274 + $0x40] sm:$0xff]
        %v329 = vld [vmem:[%s274 + $0x48] sm:$0xff]
        %v330 = vld [vmem:[%s274 + $0x50] sm:$0xff]
        %v331 = vld [vmem:[%s274 + $0x58] sm:$0xff]
        %v332 = vld [vmem:[%s274 + $0x60] sm:$0xff]
        %v333 = vld [vmem:[%s274 + $0x68] sm:$0xff]
        %v334 = vld [vmem:[%s274 + $0x70] sm:$0xff]
        %v335 = vld [vmem:[%s274 + $0x78] sm:$0xff]
        %s336 = sld [smem:[#allocation3]]
        %s337 = sld [smem:[#allocation3 + $0x1]]
        %s338 = sld [smem:[#allocation3 + $0x2]]
        %v339 = vstv %s336
        %v340 = vsub.f32 %v320, %v339
        %v341 = vsub.f32 %v321, %v339
        %v342 = vsub.f32 %v322, %v339
        %v343 = vsub.f32 %v323, %v339
        %v344 = vsub.f32 %v324, %v339
        %v345 = vsub.f32 %v325, %v339
        %v346 = vsub.f32 %v326, %v339
        %v347 = vsub.f32 %v327, %v339
        %v348 = vsub.f32 %v328, %v339
        %v349 = vsub.f32 %v329, %v339
        %v350 = vsub.f32 %v330, %v339
        %v351 = vsub.f32 %v331, %v339
        %v352 = vsub.f32 %v332, %v339
        %v353 = vsub.f32 %v333, %v339
        %v354 = vsub.f32 %v334, %v339
        %v355 = vsub.f32 %v335, %v339
        %v356 = vstv %s337
        %v357 = vmul.f32 %v340, %v356
        %v358 = vmul.f32 %v341, %v356
        %v359 = vmul.f32 %v342, %v356
        %v360 = vmul.f32 %v343, %v356
        %v361 = vmul.f32 %v344, %v356
        %v362 = vmul.f32 %v345, %v356
        %v363 = vmul.f32 %v346, %v356
        %v364 = vmul.f32 %v347, %v356
        %v365 = vmul.f32 %v348, %v356
        %v366 = vmul.f32 %v349, %v356
        %v367 = vmul.f32 %v350, %v356
        %v368 = vmul.f32 %v351, %v356
        %v369 = vmul.f32 %v352, %v356
        %v370 = vmul.f32 %v353, %v356
        %v371 = vmul.f32 %v354, %v356
        %v372 = vmul.f32 %v355, %v356
        %v373 = vround.ne.pseudo %v357
        %v374 = vround.ne.pseudo %v358
        %v375 = vround.ne.pseudo %v359
        %v376 = vround.ne.pseudo %v360
        %v377 = vround.ne.pseudo %v361
        %v378 = vround.ne.pseudo %v362
        %v379 = vround.ne.pseudo %v363
        %v380 = vround.ne.pseudo %v364
        %v381 = vround.ne.pseudo %v365
        %v382 = vround.ne.pseudo %v366
        %v383 = vround.ne.pseudo %v367
        %v384 = vround.ne.pseudo %v368
        %v385 = vround.ne.pseudo %v369
        %v386 = vround.ne.pseudo %v370
        %v387 = vround.ne.pseudo %v371
        %v388 = vround.ne.pseudo %v372
        %v389 = vstv %s338
        %v390 = vmul.f32 %v373, %v389
        %v391 = vmul.f32 %v374, %v389
        %v392 = vmul.f32 %v375, %v389
        %v393 = vmul.f32 %v376, %v389
        %v394 = vmul.f32 %v377, %v389
        %v395 = vmul.f32 %v378, %v389
        %v396 = vmul.f32 %v379, %v389
        %v397 = vmul.f32 %v380, %v389
        %v398 = vmul.f32 %v381, %v389
        %v399 = vmul.f32 %v382, %v389
        %v400 = vmul.f32 %v383, %v389
        %v401 = vmul.f32 %v384, %v389
        %v402 = vmul.f32 %v385, %v389
        %v403 = vmul.f32 %v386, %v389
        %v404 = vmul.f32 %v387, %v389
        %v405 = vmul.f32 %v388, %v389
        %v406 = vadd.f32 %v390, %v339
        %v407 = vadd.f32 %v391, %v339
        %v408 = vadd.f32 %v392, %v339
        %v409 = vadd.f32 %v393, %v339
        %v410 = vadd.f32 %v394, %v339
        %v411 = vadd.f32 %v395, %v339
        %v412 = vadd.f32 %v396, %v339
        %v413 = vadd.f32 %v397, %v339
        %v414 = vadd.f32 %v398, %v339
        %v415 = vadd.f32 %v399, %v339
        %v416 = vadd.f32 %v400, %v339
        %v417 = vadd.f32 %v401, %v339
        %v418 = vadd.f32 %v402, %v339
        %v419 = vadd.f32 %v403, %v339
        %v420 = vadd.f32 %v404, %v339
        %v421 = vadd.f32 %v405, %v339
        %v422 = vld [vmem:[#allocation2] sm:$0xff]
        %v423 = vld [vmem:[#allocation2 + $0x8] sm:$0xff]
        %v424 = vld [vmem:[%s265] sm:$0xff]
        %v425 = vld [vmem:[%s265 + $0x8] sm:$0xff]
        %426 = vmatprep.subr.mxu0 0.0
        %427 = vmatpush1.msra.mxu0 %v406
        %428 = vmatprep.subr.mxu0 0.0
        %429 = vmatpush1.msra.mxu0 %v407
        %430 = vmatprep.subr.mxu0 0.0
        %431 = vmatpush1.msra.mxu0 %v408
        %432 = vmatprep.subr.mxu0 0.0
        %433 = vmatpush1.msra.mxu0 %v409
        %434 = vmatprep.subr.mxu0 0.0
        %435 = vmatpush1.msra.mxu0 %v410
        %436 = vmatprep.subr.mxu0 0.0
        %437 = vmatpush1.msra.mxu0 %v411
        %438 = vmatprep.subr.mxu0 0.0
        %439 = vmatpush1.msra.mxu0 %v412
        %440 = vmatprep.subr.mxu0 0.0
        %441 = vmatpush1.msra.mxu0 %v413
        %442 = vmatprep.subr.mxu0 0.0
        %443 = vmatpush1.msra.mxu0 %v414
        %444 = vmatprep.subr.mxu0 0.0
        %445 = vmatpush1.msra.mxu0 %v415
        %446 = vmatprep.subr.mxu0 0.0
        %447 = vmatpush1.msra.mxu0 %v416
        %448 = vmatprep.subr.mxu0 0.0
        %449 = vmatpush1.msra.mxu0 %v417
        %450 = vmatprep.subr.mxu0 0.0
        %451 = vmatpush1.msra.mxu0 %v418
        %452 = vmatprep.subr.mxu0 0.0
        %453 = vmatpush1.msra.mxu0 %v419
        %454 = vmatprep.subr.mxu0 0.0
        %455 = vmatpush1.msra.mxu0 %v420
        %456 = vmatprep.subr.mxu0 0.0
        %457 = vmatpush1.msra.mxu0 %v421
        %458 = vmatprep.subr.mxu0 0.0
        %459 = vmatpush1.msra.mxu0 0.0
        %460 = vmatprep.subr.mxu0 0.0
        %461 = vmatpush1.msra.mxu0 0.0
        %462 = vmatprep.subr.mxu0 0.0
        %463 = vmatpush1.msra.mxu0 0.0
        %464 = vmatprep.subr.mxu0 0.0
        %465 = vmatpush1.msra.mxu0 0.0
        %466 = vmatprep.subr.mxu0 0.0
        %467 = vmatpush1.msra.mxu0 0.0
        %468 = vmatprep.subr.mxu0 0.0
        %469 = vmatpush1.msra.mxu0 0.0
        %470 = vmatprep.subr.mxu0 0.0
        %471 = vmatpush1.msra.mxu0 0.0
        %472 = vmatprep.subr.mxu0 0.0
        %473 = vmatpush1.msra.mxu0 0.0
        %474 = vmatprep.subr.mxu0 0.0
        %475 = vmatpush1.msra.mxu0 0.0
        %476 = vmatprep.subr.mxu0 0.0
        %477 = vmatpush1.msra.mxu0 0.0
        %478 = vmatprep.subr.mxu0 0.0
        %479 = vmatpush1.msra.mxu0 0.0
        %480 = vmatprep.subr.mxu0 0.0
        %481 = vmatpush1.msra.mxu0 0.0
        %482 = vmatprep.subr.mxu0 0.0
        %483 = vmatpush1.msra.mxu0 0.0
        %484 = vmatprep.subr.mxu0 0.0
        %485 = vmatpush1.msra.mxu0 0.0
        %486 = vmatprep.subr.mxu0 0.0
        %487 = vmatpush1.msra.mxu0 0.0
        %488 = vmatprep.subr.mxu0 0.0
        %489 = vmatpush1.msra.mxu0 0.0
        %490 = vmatprep.mubr.f32.mxu0 0.0
        %491 = vmatmul.mubr.f32.gmra.mrb[0].mxu0 %v424
        %v492 = vpop.f32.mrb[0].mxu0
        %v493 = vadd.f32 0.0, %v492
        %v494 = vpop.f32.mrb[0].mxu0
        %495 = vmatprep.mubr.f32.mxu0 0.0
        %496 = vmatmul.mubr.f32.gmra.mrb[0].mxu0 %v425
        %v497 = vpop.f32.mrb[0].mxu0
        %v498 = vadd.f32 0.0, %v497
        %v499 = vpop.f32.mrb[0].mxu0
        %500 = vdwg.mxu0
        %v501 = vadd.f32 %v422, %v493
        %v502 = vadd.f32 %v423, %v498
        %503 = vst [vmem:[#allocation2] sm:$0xff] %v501
        %504 = vst [vmem:[#allocation2 + $0x8] sm:$0xff] %v502
        %p505 = scmp.eq.s32.totalorder %s32, 1
        // Predicated region
        $region53: #{tpu_custom_call.1} parent=35 // pred_check
          %p506 = pneg %p505
        $region54: #{tpu_custom_call.1} parent=35 // pred_check_branch
          %508 = sbr.rel (%p506) target = $region56
        $region55: #{tpu_custom_call.1} parent=35 // pred_region
          %v509 = vld [vmem:[#allocation2] sm:$0xff]
          %v510 = vld [vmem:[#allocation2 + $0x8] sm:$0xff]
          %v511 = vld [vmem:[%s312] sm:$0x1]
          %v513 = vlaneseq
          %v514 = vshrl.u32 %v513, 7
          %v515 = vsub.s32 0, %v514
          %v516 = vrot.slane %v511, %v515
          %v518 = vadd.f32 %v509, %v516
          %v519 = vadd.f32 %v510, %v516
          %520 = vst [vmem:[%s307] sm:$0xff] %v518
          %521 = vst [vmem:[%s307 + $0x8] sm:$0xff] %v519
        $region56: #{tpu_custom_call.1} parent=35 // pred_fallthru
          _
        %s522 = sand.u32 %s157, 1
        %s523 = scalar_lea.sflag [#allocation5], %s522
        %s524 = sand.u32 %s157, 1
        %s525 = smul.addr %s524, 16
        %s526 = scalar_lea.vmem [#allocation10], %s525
        // Predicated region
        $region57: #{tpu_custom_call.1} parent=35 // pred_check
          %p527 = pneg %p167
        $region58: #{tpu_custom_call.1} parent=35 // pred_check_branch
          %529 = sbr.rel (%p527) target = $region60
        $region59: #{tpu_custom_call.1} parent=35 // pred_region
          %s530 = smul.u32 2, %s30
          %s532 = ssub.s32 256, 256
          %533 = vsyncadd %s523, %s532
          %s534 = smul.addr %s530, 2
          %s535 = sadd.s32 %s31, %s534
          %s536 = smul.addr %s535, 128
          %s537 = scalar_lea.hbm %s4, %s536
          %s538 = sshll.u32 %s526, 4
          %s539 = int_to_ptr.vmem [resolvable:$true] %s538
          %544 = dma.vmem_to_hbm [thread:$0]  %s539, 256, %s537, %s523, 128, 256, 8
        $region60: #{tpu_custom_call.1} parent=35 // pred_fallthru
          _
      $region36: #{tpu_custom_call.1} parent=5 // pred_fallthru
        _
      %p545 = scmp.le.s32.totalorder 2, %s20
      // Predicated region
      $region61: #{tpu_custom_call.1} parent=5 // pred_check
        %p546 = pneg %p545
      $region62: #{tpu_custom_call.1} parent=5 // pred_check_branch
        %548 = sbr.rel (%p546) target = $region64
      $region63: #{tpu_custom_call.1} parent=5 // pred_region
        %s549 = ssub.s32 %s20, 2
        // Predicated region
        $region65: #{tpu_custom_call.1} parent=63 // pred_check
          %p550 = pneg %p173
        $region66: #{tpu_custom_call.1} parent=63 // pred_check_branch
          %552 = sbr.rel (%p550) target = $region68
        $region67: #{tpu_custom_call.1} parent=63 // pred_region
          %s553 = sand.u32 %s158, 1
          %s554 = scalar_lea.sflag [#allocation5], %s553
          %s555 = sand.u32 %s158, 1
          %s556 = smul.addr %s555, 16
          %s557 = scalar_lea.vmem [#allocation10], %s556
          %558 = dma.done %s554, 256
        $region68: #{tpu_custom_call.1} parent=63 // pred_fallthru
          _
      $region64: #{tpu_custom_call.1} parent=5 // pred_fallthru
        _
    $region6: #{tpu_custom_call.1} parent=1 // loop_footer
      %s24 = sadd.s32 1, %s20
    $region7: #{tpu_custom_call.1} parent=1 // loop_footer_branch
      %19 = sbr.rel target = $region3
    $region8: #{tpu_custom_call.1} parent=1 // loop_exit
      _
    %559 = vsyncpa [#allocation4], 1
    %s560 = scalar_lea.sflag [#allocation4], 1
    %561 = vsyncpa %s560, 1
    %562 = vsyncpa [#allocation9], 1
    %s563 = scalar_lea.sflag [#allocation9], 1
    %564 = vsyncpa %s563, 1
    %565 = vsyncpa [#allocation5], 1
    %s566 = scalar_lea.sflag [#allocation5], 1
    %567 = vsyncpa %s566, 1
    %568 = vsyncpa [#allocation6], 1
    %s569 = scalar_lea.sflag [#allocation6], 1
    %570 = vsyncpa %s569, 1

</llo_original>
